<compile_context>
chip_gen: v6e
topology: v6e:2x2x1
jax: 0.10.0
libtpu: 0.0.40
codegen_flags: <defaults>
</compile_context>

<pallas_src>
import math
import functools

import jax
import jax.numpy as jnp
from jax.experimental import pallas as pl
from jax.experimental.pallas import tpu as pltpu


def _round_up(x, m):
    return ((x + m - 1) // m) * m


def ffn_kernel(x_ref, w1_ref, b1_ref, w2_ref, b2_ref, o_ref, acc_ref):
    # x_ref:  (TM, D)    row tile of flattened input (caller dtype)
    # w1_ref: (D, TFF)   linear1 weight tile, [in, out] layout (bf16)
    # b1_ref: (1, TFF)   linear1 bias tile (f32)
    # w2_ref: (TFF, D)   linear2 weight tile, [in, out] layout (bf16)
    # b2_ref: (1, D)     linear2 bias (f32)
    # o_ref:  (TM, D)    output row tile (written on last FF step)
    # acc_ref:(TM, D)    f32 VMEM accumulator carried across the FF grid axis
    f = pl.program_id(1)

    @pl.when(f == 0)
    def _init():
        acc_ref[...] = jnp.zeros_like(acc_ref)

    cdt = w1_ref.dtype                       # MXU compute dtype (bf16)
    x = x_ref[...].astype(cdt)

    # linear1 partial (this FF tile) + bias + ReLU, f32 accumulate on the MXU.
    h = jnp.dot(x, w1_ref[...], preferred_element_type=jnp.float32)
    h = h + b1_ref[...]
    h = jnp.maximum(h, 0.0)                  # ReLU on the VPU

    # Dropout: identity in eval/inference mode.
    # TODO(synk): training-mode dropout (pltpu.prng_random_bits mask) not emitted.

    # linear2 partial sum over this FF tile, accumulated in f32.
    acc_ref[...] += jnp.dot(h.astype(cdt), w2_ref[...],
                            preferred_element_type=jnp.float32)

    @pl.when(f == pl.num_programs(1) - 1)
    def _finalize():
        o_ref[...] = (acc_ref[...] + b2_ref[...]).astype(o_ref.dtype)


def prepare_params(w1, b1, w2, b2, compute_dtype=jnp.bfloat16):
    """One-time conversion: PyTorch layout [out, in] -> kernel layout [in, out],
    weights cast to the MXU compute dtype, biases kept f32."""
    w1_t = jnp.asarray(w1).T.astype(compute_dtype)              # (D, FF)
    w2_t = jnp.asarray(w2).T.astype(compute_dtype)              # (FF, D)
    b1_2 = jnp.asarray(b1).reshape(1, -1).astype(jnp.float32)   # (1, FF)
    b2_2 = jnp.asarray(b2).reshape(1, -1).astype(jnp.float32)   # (1, D)
    return w1_t, b1_2, w2_t, b2_2


@functools.partial(jax.jit, static_argnames=("tile_m", "tile_ff"))
def feed_forward(x, w1_t, b1, w2_t, b2, *, tile_m=256, tile_ff=512):
    """x: [B, S, D]; w1_t: [D, FF] bf16; b1: [1, FF] f32; w2_t: [FF, D] bf16; b2: [1, D] f32."""
    B, S, D = x.shape
    FF = w1_t.shape[1]
    M = B * S

    # --- M (row) tiling: big tiles feed the MXU; pad M up to a tile multiple. ---
    row_align = 16 if jnp.dtype(x.dtype).itemsize == 2 else 8
    tm = min(tile_m, _round_up(M, row_align))
    tm = _round_up(tm, row_align)
    Mp = _round_up(M, tm)

    # --- FF (hidden) tiling: bounds VMEM for large ff_dim. ---
    tff = tile_ff if (FF % tile_ff == 0) else FF

    x2 = x.reshape(M, D)
    if Mp != M:
        x2 = jnp.pad(x2, ((0, Mp - M), (0, 0)))

    grid = (Mp // tm, FF // tff)

    # VMEM budget: double-buffered blocks + f32 accumulator, with headroom.
    cbytes = jnp.dtype(w1_t.dtype).itemsize
    xbytes = jnp.dtype(x.dtype).itemsize
    vmem_need = (2 * (tm * D * xbytes          # x tile
                      + D * tff * cbytes       # W1 tile
                      + tff * D * cbytes       # W2 tile
                      + tff * 4 + D * 4        # biases
                      + tm * D * xbytes)       # out tile
                 + tm * D * 4)                 # accumulator
    vmem_limit = min(max(int(vmem_need * 2), 32 << 20), 64 << 20)

    cost = pl.CostEstimate(
        flops=4 * M * D * FF,
        transcendentals=0,
        bytes_accessed=M * D * xbytes * 2 + D * FF * cbytes * 2 + (FF + D) * 4,
    )

    out = pl.pallas_call(
        ffn_kernel,
        out_shape=jax.ShapeDtypeStruct((Mp, D), x.dtype),
        grid_spec=pltpu.PrefetchScalarGridSpec(
            num_scalar_prefetch=0,
            grid=grid,
            in_specs=[
                pl.BlockSpec((tm, D), lambda i, f: (i, 0)),    # x row tile
                pl.BlockSpec((D, tff), lambda i, f: (0, f)),   # W1^T FF tile
                pl.BlockSpec((1, tff), lambda i, f: (0, f)),   # b1 FF tile
                pl.BlockSpec((tff, D), lambda i, f: (f, 0)),   # W2^T FF tile
                pl.BlockSpec((1, D), lambda i, f: (0, 0)),     # b2
            ],
            out_specs=pl.BlockSpec((tm, D), lambda i, f: (i, 0)),
            scratch_shapes=[pltpu.VMEM((tm, D), jnp.float32)],
        ),
        compiler_params=pltpu.CompilerParams(
            dimension_semantics=("parallel", "arbitrary"),
            vmem_limit_bytes=vmem_limit,
        ),
        cost_estimate=cost,
    )(x2, w1_t, b1, w2_t, b2)

    if Mp != M:
        out = out[:M]
    return out.reshape(B, S, D)


def init_params(key, dim, ff_dim, dtype=jnp.float32):
    """Deterministic init mimicking nn.Linear defaults (uniform +-1/sqrt(fan_in))."""
    k1, k2, k3, k4 = jax.random.split(key, 4)
    bound1 = 1.0 / math.sqrt(dim)
    bound2 = 1.0 / math.sqrt(ff_dim)
    w1 = jax.random.uniform(k1, (ff_dim, dim), dtype, -bound1, bound1)
    b1 = jax.random.uniform(k2, (ff_dim,), dtype, -bound1, bound1)
    w2 = jax.random.uniform(k3, (dim, ff_dim), dtype, -bound2, bound2)
    b2 = jax.random.uniform(k4, (dim,), dtype, -bound2, bound2)
    return w1, b1, w2, b2


if __name__ == "__main__":
    # Small shapes consistent with the module: batch=2, seq=8, dim=32, ff_dim=128.
    # (Real models: D/FF multiples of 128 -> fully lane-dense stores.)
    B, S, D, FF = 2, 8, 32, 128
    key = jax.random.PRNGKey(0)
    kx, kp = jax.random.split(key)
    x = jax.random.normal(kx, (B, S, D), jnp.float32)
    w1, b1, w2, b2 = init_params(kp, D, FF)

    params = prepare_params(w1, b1, w2, b2)        # one-time transpose + bf16 cast
    y = feed_forward(x, *params)
    y = jax.block_until_ready(y)

    # Reference in plain JAX mimicking kernel math (bf16 operands, f32 accumulate,
    # eval-mode dropout == identity).
    xb = x.astype(jnp.bfloat16).astype(jnp.float32)
    w1b = w1.astype(jnp.bfloat16).astype(jnp.float32)
    w2b = w2.astype(jnp.bfloat16).astype(jnp.float32)
    h_ref = jnp.maximum(xb @ w1b.T + b1, 0.0)
    ref = h_ref.astype(jnp.bfloat16).astype(jnp.float32) @ w2b.T + b2

    assert y.shape == (B, S, D)
    assert jnp.allclose(y, ref, atol=1e-2, rtol=1e-2), "mismatch vs reference"

    print("KERNEL_OK")
</pallas_src>

<mosaic_0001>
module attributes {stable_mosaic.version = 11 : i64} {
  func.func @ffn_kernel(%arg0: i32, %arg1: i32, %arg2: memref<16x32xf32, #tpu.memory_space<vmem>>, %arg3: memref<32x128xbf16, #tpu.memory_space<vmem>>, %arg4: memref<1x128xf32, #tpu.memory_space<vmem>>, %arg5: memref<128x32xbf16, #tpu.memory_space<vmem>>, %arg6: memref<1x32xf32, #tpu.memory_space<vmem>>, %arg7: memref<16x32xf32, #tpu.memory_space<vmem>>, %arg8: memref<16x32xf32, #tpu.memory_space<vmem>>) attributes {dimension_semantics = [#tpu.dimension_semantics<parallel>, #tpu.dimension_semantics<arbitrary>], iteration_bounds = array<i64: 1, 1>, scalar_prefetch = 0 : i64, scratch_operands = 1 : i64, tpu.core_type = #tpu.core_type<tc>, window_params = [{transform_indices = @transform_0, window_bounds = array<i64: 16, 32>}, {transform_indices = @transform_1, window_bounds = array<i64: 32, 128>}, {transform_indices = @transform_2, window_bounds = array<i64: 1, 128>}, {transform_indices = @transform_3, window_bounds = array<i64: 128, 32>}, {pipeline_mode = #tpu.pipeline_mode<synchronous>, transform_indices = @transform_4, window_bounds = array<i64: 1, 32>}, {transform_indices = @transform_5, window_bounds = array<i64: 16, 32>}]} {
    %c0_i32 = arith.constant 0 : i32
    %0 = arith.cmpi eq, %arg1, %c0_i32 : i32
    %1 = arith.extui %0 : i1 to i32
    %c0_i32_0 = arith.constant 0 : i32
    %2 = arith.cmpi ne, %1, %c0_i32_0 : i32
    scf.if %2 {
      %cst_16 = arith.constant 0.000000e+00 : f32
      %21 = vector.broadcast %cst_16 : f32 to vector<16x32xf32>
      %c0_17 = arith.constant 0 : index
      %c0_18 = arith.constant 0 : index
      %22 = vector.load %arg8[%c0_17, %c0_18] : memref<16x32xf32, #tpu.memory_space<vmem>>, vector<16x32xf32>
      tpu.vector_store %arg8[%c0_17, %c0_18], %21 {strides = array<i32>} : memref<16x32xf32, #tpu.memory_space<vmem>>, vector<16x32xf32>,
    } else {
    }
    %c0 = arith.constant 0 : index
    %c0_1 = arith.constant 0 : index
    %3 = vector.load %arg2[%c0, %c0_1] : memref<16x32xf32, #tpu.memory_space<vmem>>, vector<16x32xf32>
    %4 = arith.truncf %3 : vector<16x32xf32> to vector<16x32xbf16>
    %c0_2 = arith.constant 0 : index
    %c0_3 = arith.constant 0 : index
    %5 = vector.load %arg3[%c0_2, %c0_3] : memref<32x128xbf16, #tpu.memory_space<vmem>>, vector<32x128xbf16>
    %cst = arith.constant dense<0.000000e+00> : vector<16x128xf32>
    %6 = tpu.matmul %4, %5, %cst {dimension_numbers = #tpu.dot_dimension_numbers<[1], [0], [0], [1], [0, 0, 1, 1], [], []>} : vector<16x32xbf16>, vector<32x128xbf16>, vector<16x128xf32> -> vector<16x128xf32>
    %c0_4 = arith.constant 0 : index
    %c0_5 = arith.constant 0 : index
    %7 = vector.load %arg4[%c0_4, %c0_5] : memref<1x128xf32, #tpu.memory_space<vmem>>, vector<1x128xf32>
    %8 = vector.broadcast %7 : vector<1x128xf32> to vector<16x128xf32>
    %9 = arith.addf %6, %8 : vector<16x128xf32>
    %cst_6 = arith.constant 0.000000e+00 : f32
    %10 = vector.broadcast %cst_6 : f32 to vector<16x128xf32>
    %11 = arith.maximumf %9, %10 : vector<16x128xf32>
    %c0_7 = arith.constant 0 : index
    %c0_8 = arith.constant 0 : index
    %12 = vector.load %arg8[%c0_7, %c0_8] : memref<16x32xf32, #tpu.memory_space<vmem>>, vector<16x32xf32>
    %13 = arith.truncf %11 : vector<16x128xf32> to vector<16x128xbf16>
    %c0_9 = arith.constant 0 : index
    %c0_10 = arith.constant 0 : index
    %14 = vector.load %arg5[%c0_9, %c0_10] : memref<128x32xbf16, #tpu.memory_space<vmem>>, vector<128x32xbf16>
    %cst_11 = arith.constant dense<0.000000e+00> : vector<16x32xf32>
    %15 = tpu.matmul %13, %14, %cst_11 {dimension_numbers = #tpu.dot_dimension_numbers<[1], [0], [0], [1], [0, 0, 1, 1], [], []>} : vector<16x128xbf16>, vector<128x32xbf16>, vector<16x32xf32> -> vector<16x32xf32>
    %16 = arith.addf %12, %15 : vector<16x32xf32>
    %c0_12 = arith.constant 0 : index
    %c0_13 = arith.constant 0 : index
    %17 = vector.load %arg8[%c0_12, %c0_13] : memref<16x32xf32, #tpu.memory_space<vmem>>, vector<16x32xf32>
    tpu.vector_store %arg8[%c0_12, %c0_13], %16 {strides = array<i32>} : memref<16x32xf32, #tpu.memory_space<vmem>>, vector<16x32xf32>,
    %c0_i32_14 = arith.constant 0 : i32
    %18 = arith.cmpi eq, %arg1, %c0_i32_14 : i32
    %19 = arith.extui %18 : i1 to i32
    %c0_i32_15 = arith.constant 0 : i32
    %20 = arith.cmpi ne, %19, %c0_i32_15 : i32
    scf.if %20 {
      %c0_16 = arith.constant 0 : index
      %c0_17 = arith.constant 0 : index
      %21 = vector.load %arg8[%c0_16, %c0_17] : memref<16x32xf32, #tpu.memory_space<vmem>>, vector<16x32xf32>
      %c0_18 = arith.constant 0 : index
      %c0_19 = arith.constant 0 : index
      %22 = vector.load %arg6[%c0_18, %c0_19] : memref<1x32xf32, #tpu.memory_space<vmem>>, vector<1x32xf32>
      %23 = vector.broadcast %22 : vector<1x32xf32> to vector<16x32xf32>
      %24 = arith.addf %21, %23 : vector<16x32xf32>
      %c0_20 = arith.constant 0 : index
      %c0_21 = arith.constant 0 : index
      %25 = vector.load %arg7[%c0_20, %c0_21] : memref<16x32xf32, #tpu.memory_space<vmem>>, vector<16x32xf32>
      tpu.vector_store %arg7[%c0_20, %c0_21], %24 {strides = array<i32>} : memref<16x32xf32, #tpu.memory_space<vmem>>, vector<16x32xf32>,
    } else {
    }
    return
  }
  func.func @transform_0(%arg0: i32, %arg1: i32) -> (i32, i32) {
    %c0_i32 = arith.constant 0 : i32
    %c0_i32_0 = arith.constant 0 : i32
    return %arg0, %c0_i32 : i32, i32
  }
  func.func @transform_1(%arg0: i32, %arg1: i32) -> (i32, i32) {
    %c0_i32 = arith.constant 0 : i32
    %c0_i32_0 = arith.constant 0 : i32
    return %c0_i32, %arg1 : i32, i32
  }
  func.func @transform_2(%arg0: i32, %arg1: i32) -> (i32, i32) {
    %c0_i32 = arith.constant 0 : i32
    %c0_i32_0 = arith.constant 0 : i32
    return %c0_i32, %arg1 : i32, i32
  }
  func.func @transform_3(%arg0: i32, %arg1: i32) -> (i32, i32) {
    %c0_i32 = arith.constant 0 : i32
    %c0_i32_0 = arith.constant 0 : i32
    return %arg1, %c0_i32 : i32, i32
  }
  func.func @transform_4(%arg0: i32, %arg1: i32) -> (i32, i32) {
    %c0_i32 = arith.constant 0 : i32
    %c0_i32_0 = arith.constant 0 : i32
    %c0_i32_1 = arith.constant 0 : i32
    return %c0_i32, %c0_i32_0 : i32, i32
  }
  func.func @transform_5(%arg0: i32, %arg1: i32) -> (i32, i32) {
    %c0_i32 = arith.constant 0 : i32
    %c0_i32_0 = arith.constant 0 : i32
    return %arg0, %c0_i32 : i32, i32
  }
}

</mosaic_0001>

<llo_original>
// kernel: feed_forward.1
$region0: #{feed_forward.1}
  #allocation0 [shape = 'u32[]', space=smem, size = 0x4, offset = 0x4, fixed_abs, tag = 'smem constant byte address 0x4 - core index']
  #allocation1 [shape = 'u32[144,128]{1,0:T(1,128)}', space=vmem, size = 0x12000, scoped, tag = 'internal scratch']
  #allocation2 [shape = 'f32[16,32]{1,0:T(8,128)}', space=vmem, size = 0x2000, scoped, tag = 'scratch operand']
  %s0 = inlined_call_operand.vmem [shape: f32[16,32], index: 0, kind: input, shape index: {}]
  %s1 = inlined_call_operand.vmem [shape: bf16[32,128], index: 1, kind: input, shape index: {}]
  %s2 = inlined_call_operand.vmem [shape: f32[1,128], index: 2, kind: input, shape index: {}]
  %s3 = inlined_call_operand.vmem [shape: bf16[128,32], index: 3, kind: input, shape index: {}]
  %s4 = inlined_call_operand.vmem [shape: f32[1,32], index: 4, kind: input, shape index: {}]
  %s5 = inlined_call_operand.hbm [shape: f32[16,32], index: 5, kind: output, shape index: {}]
  %s6 = sld [smem:[#allocation0]]
  $region38: #{feed_forward.1} parent=0
    _
  %s8 = ssub.s32 1, %s6
  %s9 = scalar_select 0, %s8, %s6
  $region1: #{feed_forward.1} parent=0
    #allocation3 [shape = 'u8[8192]{0}', space=vmem, size = 0x2000, scoped, tag = 'output window, operand 0, single buffered']
    #allocation4 [shape = 's32[1]{0}', space=sflag, size = 0x4, scoped, tag = 'scoped memory for feed_forward.1']
    %10 = vsyncpa [#allocation4], 0
    // Predicated region
    $region2: #{feed_forward.1} parent=1 // pred_check
      _
    $region3: #{feed_forward.1} parent=1 // pred_check_branch
      %12 = sbr.rel (0) target = $region5
    $region4: #{feed_forward.1} parent=1 // pred_region
      _
    $region5: #{feed_forward.1} parent=1 // pred_fallthru
      _
    // Predicated region
    $region6: #{feed_forward.1} parent=1 // pred_check
      _
    $region7: #{feed_forward.1} parent=1 // pred_check_branch
      %14 = sbr.rel (0) target = $region9
    $region8: #{feed_forward.1} parent=1 // pred_region
      _
    $region9: #{feed_forward.1} parent=1 // pred_fallthru
      _
    // Predicated region
    $region10: #{feed_forward.1} parent=1 // pred_check
      _
    $region11: #{feed_forward.1} parent=1 // pred_check_branch
      %16 = sbr.rel (0) target = $region13
    $region12: #{feed_forward.1} parent=1 // pred_region
      _
    $region13: #{feed_forward.1} parent=1 // pred_fallthru
      _
    // Predicated region
    $region14: #{feed_forward.1} parent=1 // pred_check
      _
    $region15: #{feed_forward.1} parent=1 // pred_check_branch
      %18 = sbr.rel (0) target = $region17
    $region16: #{feed_forward.1} parent=1 // pred_region
      _
    $region17: #{feed_forward.1} parent=1 // pred_fallthru
      _
    // Predicated region
    $region18: #{feed_forward.1} parent=1 // pred_check
      _
    $region19: #{feed_forward.1} parent=1 // pred_check_branch
      %20 = sbr.rel (0) target = $region21
    $region20: #{feed_forward.1} parent=1 // pred_region
      _
    $region21: #{feed_forward.1} parent=1 // pred_fallthru
      _
    %p22 = scmp.eq.s32.totalorder 0, 0
    // Predicated region
    $region22: #{feed_forward.1} parent=1 // pred_check
      %p23 = pneg %p22
    $region23: #{feed_forward.1} parent=1 // pred_check_branch
      %25 = sbr.rel (%p23) target = $region25
    $region24: #{feed_forward.1} parent=1 // pred_region
      %vm26 = vcmask 261120
      %27 = vst.msk [vmem:[#allocation2] sm:$0xff] %vm26, 0.0
      %28 = vst.msk [vmem:[#allocation2 + $0x8] sm:$0xff] %vm26, 0.0
    $region25: #{feed_forward.1} parent=1 // pred_fallthru
      _
    %v29 = vld [vmem:[%s0] sm:$0xff]
    %v30 = vld [vmem:[%s0 + $0x8] sm:$0xff]
    %v31 = vpack.c.bf16 %v30, %v29
    %v32 = vld [vmem:[%s1] sm:$0xf]
    %v33 = vld [vmem:[%s1 + $0x4] sm:$0xf]
    %v34 = vld [vmem:[%s1 + $0x8] sm:$0xf]
    %v35 = vld [vmem:[%s1 + $0xc] sm:$0xf]
    %v36 = vld [vmem:[%s2] sm:$0x1]
    %v38 = vlaneseq
    %v39 = vshrl.u32 %v38, 7
    %v40 = vsub.s32 0, %v39
    %v41 = vrot.slane %v36, %v40
    %v47 = vunpack.c.l.b16 %v32
    %v48 = vunpack.c.l.b16 %v33
    %v49 = vunpack.c.l.b16 %v34
    %v50 = vunpack.c.l.b16 %v35
    %v51 = vpack.c.b16 %v48, %v47
    %v52 = vpack.c.b16 %v50, %v49
    %vm55 = vcmask 261120
    %v57 = vsel %vm55, %v31, 0
    %59 = vmatprep.subr.bf16.mxu0 0
    %60 = vmatpush1.bf16.msra.mxu0 0
    %61 = vmatprep.subr.bf16.mxu0 0
    %62 = vmatpush1.bf16.msra.mxu0 0
    %63 = vmatprep.subr.bf16.mxu0 0
    %64 = vmatpush1.bf16.msra.mxu0 0
    %65 = vmatprep.subr.bf16.mxu0 0
    %66 = vmatpush1.bf16.msra.mxu0 0
    %67 = vmatprep.subr.bf16.mxu0 0
    %68 = vmatpush1.bf16.msra.mxu0 0
    %69 = vmatprep.subr.bf16.mxu0 0
    %70 = vmatpush1.bf16.msra.mxu0 0
    %71 = vmatprep.subr.bf16.mxu0 0
    %72 = vmatpush1.bf16.msra.mxu0 %v52
    %73 = vmatprep.subr.bf16.mxu0 0
    %74 = vmatpush1.bf16.msra.mxu0 %v51
    %75 = vmatprep.subr.bf16.mxu0 0
    %76 = vmatpush2.bf16.msra.mxu0 0
    %77 = vmatprep.subr.bf16.mxu0 0
    %78 = vmatpush2.bf16.msra.mxu0 0
    %79 = vmatprep.subr.bf16.mxu0 0
    %80 = vmatpush2.bf16.msra.mxu0 0
    %81 = vmatprep.subr.bf16.mxu0 0
    %82 = vmatpush2.bf16.msra.mxu0 0
    %83 = vmatprep.subr.bf16.mxu0 0
    %84 = vmatpush2.bf16.msra.mxu0 0
    %85 = vmatprep.subr.bf16.mxu0 0
    %86 = vmatpush2.bf16.msra.mxu0 0
    %87 = vmatprep.subr.bf16.mxu0 0
    %88 = vmatpush2.bf16.msra.mxu0 0
    %89 = vmatprep.subr.bf16.mxu0 0
    %90 = vmatpush2.bf16.msra.mxu0 0
    %91 = vmatprep.mubr.bf16.mxu0 0
    %92 = vmatmul.mubr.bf16.gmra.mxu0 %v57
    %v93 = vpop.f32.mrf.mxu0
    %v94 = vadd.f32 %v41, %v93
    %v95 = vpop.f32.mrf.mxu0
    %v96 = vpop.f32.mrf.mxu0
    %v97 = vadd.f32 %v41, %v96
    %v98 = vpop.f32.mrf.mxu0
    %99 = vdwg.mxu0
    %v100 = vmax.f32 %v94, 0.0
    %v101 = vmax.f32 %v97, 0.0
    %v102 = vld [vmem:[#allocation2] sm:$0xff]
    %v103 = vld [vmem:[#allocation2 + $0x8] sm:$0xff]
    %v104 = vpack.c.bf16 %v101, %v100
    %v105 = vld [vmem:[%s3] sm:$0xf]
    %v106 = vld [vmem:[%s3 + $0x4] sm:$0xf]
    %v107 = vld [vmem:[%s3 + $0x8] sm:$0xf]
    %v108 = vld [vmem:[%s3 + $0xc] sm:$0xf]
    %v109 = vld [vmem:[%s3 + $0x10] sm:$0xf]
    %v110 = vld [vmem:[%s3 + $0x14] sm:$0xf]
    %v111 = vld [vmem:[%s3 + $0x18] sm:$0xf]
    %v112 = vld [vmem:[%s3 + $0x1c] sm:$0xf]
    %v113 = vld [vmem:[%s3 + $0x20] sm:$0xf]
    %v114 = vld [vmem:[%s3 + $0x24] sm:$0xf]
    %v115 = vld [vmem:[%s3 + $0x28] sm:$0xf]
    %v116 = vld [vmem:[%s3 + $0x2c] sm:$0xf]
    %v117 = vld [vmem:[%s3 + $0x30] sm:$0xf]
    %v118 = vld [vmem:[%s3 + $0x34] sm:$0xf]
    %v119 = vld [vmem:[%s3 + $0x38] sm:$0xf]
    %v120 = vld [vmem:[%s3 + $0x3c] sm:$0xf]
    %v137 = vunpack.c.l.b16 %v105
    %v138 = vunpack.c.l.b16 %v106
    %v139 = vunpack.c.l.b16 %v107
    %v140 = vunpack.c.l.b16 %v108
    %v141 = vunpack.c.l.b16 %v109
    %v142 = vunpack.c.l.b16 %v110
    %v143 = vunpack.c.l.b16 %v111
    %v144 = vunpack.c.l.b16 %v112
    %v145 = vunpack.c.l.b16 %v113
    %v146 = vunpack.c.l.b16 %v114
    %v147 = vunpack.c.l.b16 %v115
    %v148 = vunpack.c.l.b16 %v116
    %v149 = vunpack.c.l.b16 %v117
    %v150 = vunpack.c.l.b16 %v118
    %v151 = vunpack.c.l.b16 %v119
    %v152 = vunpack.c.l.b16 %v120
    %v153 = vpack.c.b16 %v138, %v137
    %v154 = vpack.c.b16 %v140, %v139
    %v155 = vpack.c.b16 %v142, %v141
    %v156 = vpack.c.b16 %v144, %v143
    %v157 = vpack.c.b16 %v146, %v145
    %v158 = vpack.c.b16 %v148, %v147
    %v159 = vpack.c.b16 %v150, %v149
    %v160 = vpack.c.b16 %v152, %v151
    %169 = vmatprep.subr.bf16.mxu0 0
    %170 = vmatpush1.bf16.msra.mxu0 %v160
    %171 = vmatprep.subr.bf16.mxu0 0
    %172 = vmatpush1.bf16.msra.mxu0 %v159
    %173 = vmatprep.subr.bf16.mxu0 0
    %174 = vmatpush1.bf16.msra.mxu0 %v158
    %175 = vmatprep.subr.bf16.mxu0 0
    %176 = vmatpush1.bf16.msra.mxu0 %v157
    %177 = vmatprep.subr.bf16.mxu0 0
    %178 = vmatpush1.bf16.msra.mxu0 %v156
    %179 = vmatprep.subr.bf16.mxu0 0
    %180 = vmatpush1.bf16.msra.mxu0 %v155
    %181 = vmatprep.subr.bf16.mxu0 0
    %182 = vmatpush1.bf16.msra.mxu0 %v154
    %183 = vmatprep.subr.bf16.mxu0 0
    %184 = vmatpush1.bf16.msra.mxu0 %v153
    %185 = vmatprep.subr.bf16.mxu0 0
    %186 = vmatpush2.bf16.msra.mxu0 0
    %187 = vmatprep.subr.bf16.mxu0 0
    %188 = vmatpush2.bf16.msra.mxu0 0
    %189 = vmatprep.subr.bf16.mxu0 0
    %190 = vmatpush2.bf16.msra.mxu0 0
    %191 = vmatprep.subr.bf16.mxu0 0
    %192 = vmatpush2.bf16.msra.mxu0 0
    %193 = vmatprep.subr.bf16.mxu0 0
    %194 = vmatpush2.bf16.msra.mxu0 0
    %195 = vmatprep.subr.bf16.mxu0 0
    %196 = vmatpush2.bf16.msra.mxu0 0
    %197 = vmatprep.subr.bf16.mxu0 0
    %198 = vmatpush2.bf16.msra.mxu0 0
    %199 = vmatprep.subr.bf16.mxu0 0
    %200 = vmatpush2.bf16.msra.mxu0 0
    %201 = vmatprep.mubr.bf16.mxu0 0
    %202 = vmatmul.mubr.bf16.gmra.mxu0 %v104
    %v203 = vpop.f32.mrf.mxu0
    %v204 = vadd.f32 0.0, %v203
    %v205 = vpop.f32.mrf.mxu0
    %v206 = vpop.f32.mrf.mxu0
    %v207 = vadd.f32 0.0, %v206
    %v208 = vpop.f32.mrf.mxu0
    %209 = vdwg.mxu0
    %v210 = vadd.f32 %v102, %v204
    %v211 = vadd.f32 %v103, %v207
    %212 = vst.msk [vmem:[#allocation2] sm:$0xff] %vm55, %v210
    %213 = vst.msk [vmem:[#allocation2 + $0x8] sm:$0xff] %vm55, %v211
    // Predicated region
    $region26: #{feed_forward.1} parent=1 // pred_check
      %p214 = pneg %p22
    $region27: #{feed_forward.1} parent=1 // pred_check_branch
      %216 = sbr.rel (%p214) target = $region29
    $region28: #{feed_forward.1} parent=1 // pred_region
      %v217 = vld [vmem:[#allocation2] sm:$0xff]
      %v218 = vld [vmem:[#allocation2 + $0x8] sm:$0xff]
      %v219 = vld [vmem:[%s4] sm:$0x1]
      %v221 = vlaneseq
      %v222 = vshrl.u32 %v221, 7
      %v223 = vsub.s32 0, %v222
      %v224 = vrot.slane %v219, %v223
      %v226 = vadd.f32 %v217, %v224
      %v227 = vadd.f32 %v218, %v224
      %228 = vst.msk [vmem:[#allocation3] sm:$0xff] %vm55, %v226
      %229 = vst.msk [vmem:[#allocation3 + $0x8] sm:$0xff] %vm55, %v227
    $region29: #{feed_forward.1} parent=1 // pred_fallthru
      _
    // Predicated region
    $region30: #{feed_forward.1} parent=1 // pred_check
      _
    $region31: #{feed_forward.1} parent=1 // pred_check_branch
      %231 = sbr.rel (0) target = $region33
    $region32: #{feed_forward.1} parent=1 // pred_region
      %s233 = ssub.s32 256, 256
      %234 = vsyncadd [#allocation4], %s233
      %s235 = sshll.u32 [#allocation3], 4
      %s236 = int_to_ptr.vmem [resolvable:$true] %s235
      %241 = dma.vmem_to_hbm [thread:$0]  %s236, 256, %s5, [#allocation4], 128, 128, 8
    $region33: #{feed_forward.1} parent=1 // pred_fallthru
      _
    // Predicated region
    $region34: #{feed_forward.1} parent=1 // pred_check
      _
    $region35: #{feed_forward.1} parent=1 // pred_check_branch
      %243 = sbr.rel (0) target = $region37
    $region36: #{feed_forward.1} parent=1 // pred_region
      %244 = dma.done [#allocation4], 256
    $region37: #{feed_forward.1} parent=1 // pred_fallthru
      _
    %245 = vsyncpa [#allocation4], 1

</llo_original>
